<compile_context>
chip_gen: v6e
topology: v6e:2x2x1
jax: 0.10.0
libtpu: 0.0.40
codegen_flags: <defaults>
</compile_context>

<pallas_src>
import functools

import jax
import jax.numpy as jnp
import numpy as np
from jax.experimental import pallas as pl
from jax.experimental.pallas import tpu as pltpu

BN_EPS = 1e-5  # nn.BatchNorm1d default
LANE = 128


def _round_up(x, m):
  return (x + m - 1) // m * m


# ---------------------------------------------------------------------------
# Stage 1: token embedding  y = x @ W_emb^T + b   (Linear(1024 -> E))
# x is read as-is (f32); bf16 cast happens in-vregs.  Rows >= seq_len (the
# partial last tile and the round-up-to-8 pad) are zeroed so Stage 2's rolls /
# BN masking always see finite data.
# ---------------------------------------------------------------------------
def _embedding_kernel(x_ref, w_ref, b_ref, o_ref, *, seq_len, tile_rows):
  # x_ref: (1, TL, 1024) f32 ; w_ref: (1024, Ep) bf16 ; b_ref: (1, Ep) f32
  t = pl.program_id(1)
  y = jnp.dot(x_ref[0].astype(jnp.bfloat16), w_ref[...],
              preferred_element_type=jnp.float32) + b_ref[...]
  row = t * tile_rows + jax.lax.broadcasted_iota(jnp.int32, (y.shape[0], 1), 0)
  o_ref[0] = jnp.where(row < seq_len, y, 0.0).astype(o_ref.dtype)


# ---------------------------------------------------------------------------
# Stage 2 per-layer kernel (grid over batch):
#   optional BN-normalize of the previous layer (x * s + t, f32),
#   Conv1d as k per-tap bf16 matmuls with f32 accumulation,
#   bias + ReLU (f32), store z (f32),
#   one-sweep masked partial BN stats: [sum(z), sum(z*z)] over valid rows.
# ---------------------------------------------------------------------------
def _conv_relu_stats_kernel(x_ref, s_ref, t_ref, w_ref, b_ref, z_ref, stat_ref,
                            *, k, valid_out, rows, pre_affine):
  x = x_ref[0]                                       # (rows, Cin_p)
  if pre_affine:                                     # BN of the previous layer
    x = x * s_ref[...] + t_ref[...]                  # f32
  a16 = x.astype(jnp.bfloat16)                       # bf16 staging for taps

  z = jnp.dot(a16, w_ref[0], preferred_element_type=jnp.float32)
  for dk in range(1, k):                             # per-tap accumulation
    tap = pltpu.roll(a16, shift=rows - dk, axis=0)   # tap[i] = a16[(i+dk) % rows]
    z = z + jnp.dot(tap, w_ref[dk], preferred_element_type=jnp.float32)
  z = jnp.maximum(z + b_ref[...], 0.0)               # bias + ReLU (f32)
  z_ref[0] = z.astype(z_ref.dtype)

  row = jax.lax.broadcasted_iota(jnp.int32, (rows, 1), 0)
  zm = jnp.where(row < valid_out, z, 0.0)            # mask pad / wrapped rows
  stat_ref[0] = jnp.concatenate(
      [jnp.sum(zm, axis=0, keepdims=True),
       jnp.sum(zm * zm, axis=0, keepdims=True)], axis=0)
  # TODO(synk): BatchNorm running-stat updates (training-mode side effect) are
  # not reproduced; they do not affect the forward output.


def _conv_layer(x_in, s, t, w, b, *, k, valid_out, pre_affine, rows, cin_p,
                cout_p, vmem_bytes):
  batch = x_in.shape[0]
  kern = functools.partial(_conv_relu_stats_kernel, k=k, valid_out=valid_out,
                           rows=rows, pre_affine=pre_affine)
  return pl.pallas_call(
      kern,
      out_shape=(jax.ShapeDtypeStruct((batch, rows, cout_p), jnp.float32),
                 jax.ShapeDtypeStruct((batch, 2, cout_p), jnp.float32)),
      grid=(batch,),
      in_specs=[
          pl.BlockSpec((1, rows, cin_p), lambda bb: (bb, 0, 0)),
          pl.BlockSpec((1, cin_p), lambda bb: (0, 0)),
          pl.BlockSpec((1, cin_p), lambda bb: (0, 0)),
          pl.BlockSpec((k, cin_p, cout_p), lambda bb: (0, 0, 0)),
          pl.BlockSpec((1, cout_p), lambda bb: (0, 0)),
      ],
      out_specs=[
          pl.BlockSpec((1, rows, cout_p), lambda bb: (bb, 0, 0)),
          pl.BlockSpec((1, 2, cout_p), lambda bb: (bb, 0, 0)),
      ],
      compiler_params=pltpu.CompilerParams(
          dimension_semantics=("parallel",),
          vmem_limit_bytes=vmem_bytes),
  )(x_in, s, t, w, b)


def _bn_affine(stat, gamma, beta, n, cp):
  """Reduce per-batch partial stats -> per-channel BN scale/shift (tiny XLA)."""
  tot = jnp.sum(stat, axis=0)                        # (2, cp)
  mean = tot[0] / n
  var = jnp.maximum(tot[1] / n - mean * mean, 0.0)   # one-sweep E[z^2]-m^2
  g = jnp.pad(gamma.astype(jnp.float32), (0, cp - gamma.shape[0]))
  be = jnp.pad(beta.astype(jnp.float32), (0, cp - beta.shape[0]))
  s = g * jax.lax.rsqrt(var + BN_EPS)
  t = be - mean * s
  return s.reshape(1, cp), t.reshape(1, cp)


# ---------------------------------------------------------------------------
# Wrapper
# ---------------------------------------------------------------------------
def pretrain_protein_cnn(x, params):
  (w_emb, b_emb,
   w1, b1, g1, be1,
   w2, b2, g2, be2,
   w3, b3, g3, be3) = params

  B, L, D_in = x.shape
  E = w_emb.shape[0]
  F1, F2, F3 = w1.shape[0], w2.shape[0], w3.shape[0]
  k1, k2, k3 = w1.shape[2], w2.shape[2], w3.shape[2]
  L1 = L - (k1 - 1)
  L2 = L1 - (k2 - 1)
  L3 = L2 - (k3 - 1)

  Ep, F1p, F2p, F3p = (_round_up(c, LANE) for c in (E, F1, F2, F3))
  Lp = _round_up(L, 8)                 # only 8-row pad; NOT rounded to tile size
  TL = min(1024, Lp)                   # big f32 input tiles, partial last tile

  f32, bf16 = jnp.float32, jnp.bfloat16

  # ---- parameter prep (tiny glue) ----
  w_emb_t = jnp.pad(jnp.transpose(w_emb, (1, 0)),
                    ((0, 0), (0, Ep - E))).astype(bf16)          # (1024, Ep)
  b_emb_p = jnp.pad(b_emb, (0, Ep - E)).reshape(1, Ep).astype(f32)

  def conv_weight(w, cin_p, cout_p):
    # (C_out, C_in, k) -> (k, C_in_p, C_out_p) bf16 (per-tap matmul weights)
    k, cin, cout = w.shape[2], w.shape[1], w.shape[0]
    wt = jnp.transpose(w, (2, 1, 0))                             # (k, Cin, Cout)
    wt = jnp.pad(wt, ((0, 0), (0, cin_p - cin), (0, cout_p - cout)))
    return wt.astype(bf16)

  def chan_vec(v, n):
    return jnp.pad(v, (0, n - v.shape[0])).reshape(1, n).astype(f32)

  w1c, w2c, w3c = (conv_weight(w1, Ep, F1p), conv_weight(w2, F1p, F2p),
                   conv_weight(w3, F2p, F3p))
  b1p, b2p, b3p = chan_vec(b1, F1p), chan_vec(b2, F2p), chan_vec(b3, F3p)

  stage1_vmem = int(min(64 << 20, max(24 << 20, 14 * TL * D_in)))
  stage2_vmem = int(min(64 << 20, max(24 << 20, 48 * Lp * LANE)))

  # ---- stage 1: embedding Linear (x read as-is; bf16 cast + pad-row zeroing
  #      happen in-kernel) ----
  emb = pl.pallas_call(
      functools.partial(_embedding_kernel, seq_len=L, tile_rows=TL),
      out_shape=jax.ShapeDtypeStruct((B, Lp, Ep), bf16),
      grid=(B, pl.cdiv(Lp, TL)),
      in_specs=[
          pl.BlockSpec((1, TL, D_in), lambda b, t: (b, t, 0)),
          pl.BlockSpec((D_in, Ep), lambda b, t: (0, 0)),
          pl.BlockSpec((1, Ep), lambda b, t: (0, 0)),
      ],
      out_specs=pl.BlockSpec((1, TL, Ep), lambda b, t: (b, t, 0)),
      compiler_params=pltpu.CompilerParams(
          dimension_semantics=("parallel", "parallel"),
          vmem_limit_bytes=stage1_vmem),
  )(x, w_emb_t, b_emb_p)

  # ---- stage 2: three gridded conv layers with two-pass (cross-call) BN ----
  dummy = jnp.zeros((1, Ep), f32)      # layer 1 has no preceding BN
  z1, st1 = _conv_layer(emb, dummy, dummy, w1c, b1p, k=k1, valid_out=L1,
                        pre_affine=False, rows=Lp, cin_p=Ep, cout_p=F1p,
                        vmem_bytes=stage2_vmem)
  s1, t1 = _bn_affine(st1, g1, be1, float(B * L1), F1p)

  z2, st2 = _conv_layer(z1, s1, t1, w2c, b2p, k=k2, valid_out=L2,
                        pre_affine=True, rows=Lp, cin_p=F1p, cout_p=F2p,
                        vmem_bytes=stage2_vmem)
  s2, t2 = _bn_affine(st2, g2, be2, float(B * L2), F2p)

  z3, st3 = _conv_layer(z2, s2, t2, w3c, b3p, k=k3, valid_out=L3,
                        pre_affine=True, rows=Lp, cin_p=F2p, cout_p=F3p,
                        vmem_bytes=stage2_vmem)
  s3, t3 = _bn_affine(st3, g3, be3, float(B * L3), F3p)

  # ---- final BN3 normalize, fused by XLA with the unavoidable slice +
  #      NCL-transpose + .view glue (one pass over the small output) ----
  out_cl = z3[:, :L3, :F3] * s3[0, :F3] + t3[0, :F3]             # (B, L3, F3)
  v_ncl = jnp.transpose(out_cl, (0, 2, 1))                       # (B, F3, L3)
  return v_ncl.reshape(B, L3, -1)                                # PyTorch .view


# ---------------------------------------------------------------------------
# Pure-JAX reference (PyTorch semantics, same bf16-input / f32-accumulate
# matmul numerics as the kernel).
# ---------------------------------------------------------------------------
def reference(x, params):
  (w_emb, b_emb,
   w1, b1, g1, be1,
   w2, b2, g2, be2,
   w3, b3, g3, be3) = params
  bf16 = jnp.bfloat16

  v = jnp.matmul(x.astype(jnp.float32).astype(bf16), w_emb.T.astype(bf16),
                 preferred_element_type=jnp.float32) + b_emb
  v = jnp.transpose(v, (0, 2, 1))                                # (B, E, L)

  def conv1d(v, w, b):
    y = jax.lax.conv_general_dilated(
        v.astype(bf16), w.astype(bf16), (1,), 'VALID',
        dimension_numbers=('NCH', 'OIH', 'NCH'),
        preferred_element_type=jnp.float32)
    return y + b[None, :, None]

  def bn(v, g, be):
    m = v.mean(axis=(0, 2), keepdims=True)
    var = ((v - m) ** 2).mean(axis=(0, 2), keepdims=True)
    return (v - m) / jnp.sqrt(var + BN_EPS) * g[None, :, None] + be[None, :, None]

  v = bn(jax.nn.relu(conv1d(v, w1, b1)), g1, be1)
  v = bn(jax.nn.relu(conv1d(v, w2, b2)), g2, be2)
  v = bn(jax.nn.relu(conv1d(v, w3, b3)), g3, be3)
  return v.reshape(v.shape[0], v.shape[2], -1)                   # .view(B, L3, -1)


if __name__ == "__main__":
  B, L = 2, 16
  embedding_dim = 32
  num_filters = [32, 64, 128]
  kernel_size = [3, 3, 3]
  E = embedding_dim
  F1, F2, F3 = num_filters
  k1, k2, k3 = kernel_size

  keys = jax.random.split(jax.random.PRNGKey(0), 16)
  x = jax.random.normal(keys[0], (B, L, 1024), jnp.float32)

  w_emb = 0.02 * jax.random.normal(keys[1], (E, 1024), jnp.float32)
  b_emb = 0.01 * jax.random.normal(keys[2], (E,), jnp.float32)
  w1 = 0.05 * jax.random.normal(keys[3], (F1, E, k1), jnp.float32)
  b1 = 0.01 * jax.random.normal(keys[4], (F1,), jnp.float32)
  g1 = 1.0 + 0.1 * jax.random.normal(keys[5], (F1,), jnp.float32)
  be1 = 0.1 * jax.random.normal(keys[6], (F1,), jnp.float32)
  w2 = 0.05 * jax.random.normal(keys[7], (F2, F1, k2), jnp.float32)
  b2 = 0.01 * jax.random.normal(keys[8], (F2,), jnp.float32)
  g2 = 1.0 + 0.1 * jax.random.normal(keys[9], (F2,), jnp.float32)
  be2 = 0.1 * jax.random.normal(keys[10], (F2,), jnp.float32)
  w3 = 0.05 * jax.random.normal(keys[11], (F3, F2, k3), jnp.float32)
  b3 = 0.01 * jax.random.normal(keys[12], (F3,), jnp.float32)
  g3 = 1.0 + 0.1 * jax.random.normal(keys[13], (F3,), jnp.float32)
  be3 = 0.1 * jax.random.normal(keys[14], (F3,), jnp.float32)

  params = (w_emb, b_emb, w1, b1, g1, be1, w2, b2, g2, be2, w3, b3, g3, be3)

  out = jax.block_until_ready(pretrain_protein_cnn(x, params))
  ref = jax.block_until_ready(reference(x, params))

  assert out.shape == ref.shape, (out.shape, ref.shape)
  # Both sides use bf16-input / f32-accumulate matmul numerics; residual
  # differences are accumulation order and BN algebra rearrangements.
  np.testing.assert_allclose(np.asarray(out), np.asarray(ref), rtol=5e-3, atol=5e-3)
  print("KERNEL_OK")
</pallas_src>

<mosaic_0001>
module attributes {stable_mosaic.version = 11 : i64} {
  func.func @_embedding_kernel(%arg0: i32, %arg1: i32, %arg2: memref<1x16x1024xf32, #tpu.memory_space<vmem>>, %arg3: memref<1024x128xbf16, #tpu.memory_space<vmem>>, %arg4: memref<1x128xf32, #tpu.memory_space<vmem>>, %arg5: memref<1x16x128xbf16, #tpu.memory_space<vmem>>) attributes {dimension_semantics = [#tpu.dimension_semantics<parallel>, #tpu.dimension_semantics<parallel>], iteration_bounds = array<i64: 2, 1>, scalar_prefetch = 0 : i64, scratch_operands = 0 : i64, tpu.core_type = #tpu.core_type<tc>, window_params = [{transform_indices = @transform_0, window_bounds = array<i64: 1, 16, 1024>}, {pipeline_mode = #tpu.pipeline_mode<synchronous>, transform_indices = @transform_1, window_bounds = array<i64: 1024, 128>}, {pipeline_mode = #tpu.pipeline_mode<synchronous>, transform_indices = @transform_2, window_bounds = array<i64: 1, 128>}, {transform_indices = @transform_3, window_bounds = array<i64: 1, 16, 128>}]} {
    %c0 = arith.constant 0 : index
    %c0_0 = arith.constant 0 : index
    %c0_1 = arith.constant 0 : index
    %0 = vector.load %arg2[%c0, %c0_0, %c0_1] : memref<1x16x1024xf32, #tpu.memory_space<vmem>>, vector<1x16x1024xf32>
    %1 = vector.shape_cast %0 : vector<1x16x1024xf32> to vector<16x1024xf32>
    %2 = arith.truncf %1 : vector<16x1024xf32> to vector<16x1024xbf16>
    %c0_2 = arith.constant 0 : index
    %c0_3 = arith.constant 0 : index
    %3 = vector.load %arg3[%c0_2, %c0_3] : memref<1024x128xbf16, #tpu.memory_space<vmem>>, vector<1024x128xbf16>
    %cst = arith.constant dense<0.000000e+00> : vector<16x128xf32>
    %4 = tpu.matmul %2, %3, %cst {dimension_numbers = #tpu.dot_dimension_numbers<[1], [0], [0], [1], [0, 0, 1, 1], [], []>} : vector<16x1024xbf16>, vector<1024x128xbf16>, vector<16x128xf32> -> vector<16x128xf32>
    %c0_4 = arith.constant 0 : index
    %c0_5 = arith.constant 0 : index
    %5 = vector.load %arg4[%c0_4, %c0_5] : memref<1x128xf32, #tpu.memory_space<vmem>>, vector<1x128xf32>
    %6 = vector.broadcast %5 : vector<1x128xf32> to vector<16x128xf32>
    %7 = arith.addf %4, %6 : vector<16x128xf32>
    %c16_i32 = arith.constant 16 : i32
    %8 = arith.muli %arg1, %c16_i32 : i32
    %9 = tpu.iota {dimensions = array<i32: 0>} : vector<16x1xi32>
    %10 = vector.broadcast %8 : i32 to vector<16x1xi32>
    %11 = arith.addi %10, %9 : vector<16x1xi32>
    %c16_i32_6 = arith.constant 16 : i32
    %12 = vector.broadcast %c16_i32_6 : i32 to vector<16x1xi32>
    %13 = arith.cmpi slt, %11, %12 : vector<16x1xi32>
    %cst_7 = arith.constant 0.000000e+00 : f32
    %14 = vector.shape_cast %13 : vector<16x1xi1> to vector<16x1xi1>
    %15 = vector.broadcast %14 : vector<16x1xi1> to vector<16x128xi1>
    %16 = vector.broadcast %cst_7 : f32 to vector<16x128xf32>
    %17 = arith.select %15, %7, %16 : vector<16x128xi1>, vector<16x128xf32>
    %18 = arith.truncf %17 : vector<16x128xf32> to vector<16x128xbf16>
    %c0_8 = arith.constant 0 : index
    %c0_9 = arith.constant 0 : index
    %c0_10 = arith.constant 0 : index
    %19 = vector.load %arg5[%c0_8, %c0_9, %c0_10] : memref<1x16x128xbf16, #tpu.memory_space<vmem>>, vector<1x16x128xbf16>
    %20 = vector.shape_cast %19 : vector<1x16x128xbf16> to vector<16x128xbf16>
    %21 = vector.shape_cast %18 : vector<16x128xbf16> to vector<1x16x128xbf16>
    tpu.vector_store %arg5[%c0_8, %c0_9, %c0_10], %21 {strides = array<i32>} : memref<1x16x128xbf16, #tpu.memory_space<vmem>>, vector<1x16x128xbf16>,
    return
  }
  func.func @transform_0(%arg0: i32, %arg1: i32) -> (i32, i32, i32) {
    %c0_i32 = arith.constant 0 : i32
    %c0_i32_0 = arith.constant 0 : i32
    return %arg0, %arg1, %c0_i32 : i32, i32, i32
  }
  func.func @transform_1(%arg0: i32, %arg1: i32) -> (i32, i32) {
    %c0_i32 = arith.constant 0 : i32
    %c0_i32_0 = arith.constant 0 : i32
    %c0_i32_1 = arith.constant 0 : i32
    return %c0_i32, %c0_i32_0 : i32, i32
  }
  func.func @transform_2(%arg0: i32, %arg1: i32) -> (i32, i32) {
    %c0_i32 = arith.constant 0 : i32
    %c0_i32_0 = arith.constant 0 : i32
    %c0_i32_1 = arith.constant 0 : i32
    return %c0_i32, %c0_i32_0 : i32, i32
  }
  func.func @transform_3(%arg0: i32, %arg1: i32) -> (i32, i32, i32) {
    %c0_i32 = arith.constant 0 : i32
    %c0_i32_0 = arith.constant 0 : i32
    return %arg0, %arg1, %c0_i32 : i32, i32, i32
  }
}

</mosaic_0001>

<llo_original>
// kernel: tpu_custom_call.1
$region0: #{tpu_custom_call.1}
  #allocation0 [shape = 'u32[]', space=smem, size = 0x4, offset = 0x4, fixed_abs, tag = 'smem constant byte address 0x4 - core index']
  #allocation1 [shape = 'u32[144,128]{1,0:T(1,128)}', space=vmem, size = 0x12000, scoped, tag = 'internal scratch']
  %s0 = inlined_call_operand.hbm [shape: f32[2,16,1024], index: 0, kind: input, shape index: {}]
  %s1 = inlined_call_operand.hbm [shape: bf16[1024,128], index: 1, kind: input, shape index: {}]
  %s2 = inlined_call_operand.vmem [shape: f32[1,128], index: 2, kind: input, shape index: {}]
  %s3 = inlined_call_operand.hbm [shape: bf16[2,16,128], index: 3, kind: output, shape index: {}]
  %s4 = sld [smem:[#allocation0]]
  $region53: #{tpu_custom_call.1} parent=0
    _
  %s6 = ssub.s32 1, %s4
  %s7 = scalar_select 0, %s6, %s4
  $region1: #{tpu_custom_call.1} parent=0
    #allocation2 [shape = 'u8[131072]{0}', space=vmem, size = 0x20000, scoped, tag = 'input window, operand 0']
    #allocation3 [shape = 's32[2]{0}', space=sflag, size = 0x8, scoped, tag = 'scoped memory for tpu_custom_call.1']
    #allocation4 [shape = 's32[2]{0}', space=sflag, size = 0x8, scoped, tag = 'scoped memory for tpu_custom_call.1']
    #allocation5 [shape = 'u8[262144]{0}', space=vmem, size = 0x40000, scoped, tag = 'input window, operand 1, single buffered']
    #allocation6 [shape = 's32[1]{0}', space=sflag, size = 0x4, scoped, tag = 'scoped memory for tpu_custom_call.1']
    #allocation7 [shape = 'u8[8192]{0}', space=vmem, size = 0x2000, scoped, tag = 'output window, operand 0']
    %8 = vsyncpa [#allocation3], 0
    %s9 = scalar_lea.sflag [#allocation3], 1
    %10 = vsyncpa %s9, 0
    %11 = vsyncpa [#allocation6], 0
    %12 = vsyncpa [#allocation4], 0
    %s13 = scalar_lea.sflag [#allocation4], 1
    %14 = vsyncpa %s13, 0
    loop: start=0, step=1, limit=4
    $region2: #{tpu_custom_call.1} parent=1 // loop_pre_header
      _
    $region3: #{tpu_custom_call.1} parent=1 // loop_header
      %s16 = sphi 0, %s20
      %p17 = scmp.ge.s32.totalorder %s16, 4
      %s23 = sphi 0, %s35
      %s24 = sphi 0, %s31
      %s25 = sphi 0, %s23
      %s26 = sphi 0, %s24
      %s27 = sphi 0, %s25
      %s28 = sphi 0, %s26
      %s40 = sphi 0, %s42
      %s43 = sphi 0, %s40
      %s44 = sphi 0, %s43
      %s60 = sphi 0, %s44
      %s64 = sphi 0, %s64
      %s66 = sphi 0, %s64
      %s67 = sphi 0, %s66
      %s81 = sphi 0, %s67
      %s85 = sphi 0, %s85
      %s87 = sphi 0, %s85
      %s88 = sphi 0, %s87
      %s102 = sphi 0, %s88
      %s110 = sphi 0, %s112
      %s113 = sphi 0, %s110
      %s114 = sphi 0, %s113
      %s130 = sphi 0, %s114
    $region4: #{tpu_custom_call.1} parent=1 // loop_header_branch
      %19 = sbr.rel (%p17) target = $region8
    $region5: #{tpu_custom_call.1} parent=1 // loop_body
      %s21 = ssub.s32 %s16, 1
      %s22 = ssub.s32 %s16, 2
      %s29 = sadd.s32 1, %s24
      %p30 = scmp.ge.s32.totalorder %s29, 1
      %s31 = scalar_select %p30, 0, %s29
      %s32 = sadd.s32 1, %s23
      %s33 = scalar_select %p30, %s32, %s23
      %p34 = scmp.ge.s32.totalorder %s33, 2
      %s35 = scalar_select %p34, 0, %s33
      %s36 = ssub.s32 %s23, %s35
      %s37 = ssub.s32 %s24, %s31
      %s38 = sor.u32 %s36, %s37
      %p39 = scmp.eq.s32.totalorder %s38, 0
      %s41 = sadd.s32 %s40, 1
      %s42 = scalar_select %p39, %s40, %s41
      %p45 = pneg %p39
      %p46 = scmp.eq.s32.totalorder %s16, 1
      %p47 = por %p45, %p46
      %p48 = scmp.ne.s32.totalorder %s40, %s43
      %p49 = scmp.eq.s32.totalorder %s16, 0
      %p50 = por %p48, %p49
      %p51 = scmp.ne.s32.totalorder %s40, %s43
      %p52 = scmp.eq.s32.totalorder %s21, 1
      %p53 = por %p51, %p52
      %p54 = scmp.ne.s32.totalorder %s43, %s44
      %p55 = scmp.eq.s32.totalorder %s21, 0
      %p56 = por %p54, %p55
      %p57 = scmp.ne.s32.totalorder %s43, %s44
      %p58 = scmp.eq.s32.totalorder %s22, 1
      %p59 = por %p57, %p58
      %p61 = scmp.ne.s32.totalorder %s44, %s60
      %p62 = scmp.eq.s32.totalorder %s22, 0
      %p63 = por %p61, %p62
      %s65 = sadd.s32 %s64, 1
      %p68 = scmp.eq.s32.totalorder %s16, 1
      %p69 = scmp.ne.s32.totalorder %s64, %s66
      %p70 = scmp.eq.s32.totalorder %s16, 0
      %p71 = por %p69, %p70
      %p72 = scmp.ne.s32.totalorder %s64, %s66
      %p73 = scmp.eq.s32.totalorder %s21, 1
      %p74 = por %p72, %p73
      %p75 = scmp.ne.s32.totalorder %s66, %s67
      %p76 = scmp.eq.s32.totalorder %s21, 0
      %p77 = por %p75, %p76
      %p78 = scmp.ne.s32.totalorder %s66, %s67
      %p79 = scmp.eq.s32.totalorder %s22, 1
      %p80 = por %p78, %p79
      %p82 = scmp.ne.s32.totalorder %s67, %s81
      %p83 = scmp.eq.s32.totalorder %s22, 0
      %p84 = por %p82, %p83
      %s86 = sadd.s32 %s85, 1
      %p89 = scmp.eq.s32.totalorder %s16, 1
      %p90 = scmp.ne.s32.totalorder %s85, %s87
      %p91 = scmp.eq.s32.totalorder %s16, 0
      %p92 = por %p90, %p91
      %p93 = scmp.ne.s32.totalorder %s85, %s87
      %p94 = scmp.eq.s32.totalorder %s21, 1
      %p95 = por %p93, %p94
      %p96 = scmp.ne.s32.totalorder %s87, %s88
      %p97 = scmp.eq.s32.totalorder %s21, 0
      %p98 = por %p96, %p97
      %p99 = scmp.ne.s32.totalorder %s87, %s88
      %p100 = scmp.eq.s32.totalorder %s22, 1
      %p101 = por %p99, %p100
      %p103 = scmp.ne.s32.totalorder %s88, %s102
      %p104 = scmp.eq.s32.totalorder %s22, 0
      %p105 = por %p103, %p104
      %s106 = ssub.s32 %s23, %s35
      %s107 = ssub.s32 %s24, %s31
      %s108 = sor.u32 %s106, %s107
      %p109 = scmp.eq.s32.totalorder %s108, 0
      %s111 = sadd.s32 %s110, 1
      %s112 = scalar_select %p109, %s110, %s111
      %p115 = pneg %p109
      %p116 = scmp.eq.s32.totalorder %s16, 1
      %p117 = por %p115, %p116
      %p118 = scmp.ne.s32.totalorder %s110, %s113
      %p119 = scmp.eq.s32.totalorder %s16, 0
      %p120 = por %p118, %p119
      %p121 = scmp.ne.s32.totalorder %s110, %s113
      %p122 = scmp.eq.s32.totalorder %s21, 1
      %p123 = por %p121, %p122
      %p124 = scmp.ne.s32.totalorder %s113, %s114
      %p125 = scmp.eq.s32.totalorder %s21, 0
      %p126 = por %p124, %p125
      %p127 = scmp.ne.s32.totalorder %s113, %s114
      %p128 = scmp.eq.s32.totalorder %s22, 1
      %p129 = por %p127, %p128
      %p131 = scmp.ne.s32.totalorder %s114, %s130
      %p132 = scmp.eq.s32.totalorder %s22, 0
      %p133 = por %p131, %p132
      %p134 = scmp.le.s32.totalorder 1, %s16
      %p135 = scmp.lt.s32.totalorder %s16, 3
      %p136 = pnand %p134, %p135
      %p137 = pneg %p136
      // Predicated region
      $region9: #{tpu_custom_call.1} parent=5 // pred_check
        _
      $region10: #{tpu_custom_call.1} parent=5 // pred_check_branch
        %139 = sbr.rel (%p136) target = $region12
      $region11: #{tpu_custom_call.1} parent=5 // pred_region
        %s140 = ssub.s32 %s16, 1
        // Predicated region
        $region13: #{tpu_custom_call.1} parent=11 // pred_check
          %p141 = pneg %p77
        $region14: #{tpu_custom_call.1} parent=11 // pred_check_branch
          %143 = sbr.rel (%p141) target = $region16
        $region15: #{tpu_custom_call.1} parent=11 // pred_region
          %s145 = ssub.s32 8192, 8192
          %146 = vsyncadd [#allocation6], %s145
          %s147 = sshll.u32 [#allocation5], 4
          %s148 = int_to_ptr.vmem [resolvable:$true] %s147
          %153 = dma.hbm_to_vmem [thread:$0]  %s1, 8192, %s148, [#allocation6], 64, 64, 4
        $region16: #{tpu_custom_call.1} parent=11 // pred_fallthru
          _
        // Predicated region
        $region17: #{tpu_custom_call.1} parent=11 // pred_check
          %p154 = pneg %p98
        $region18: #{tpu_custom_call.1} parent=11 // pred_check_branch
          %156 = sbr.rel (%p154) target = $region20
        $region19: #{tpu_custom_call.1} parent=11 // pred_region
          _
        $region20: #{tpu_custom_call.1} parent=11 // pred_fallthru
          _
      $region12: #{tpu_custom_call.1} parent=5 // pred_fallthru
        _
      %p157 = scmp.lt.s32.totalorder %s16, 2
      // Predicated region
      $region21: #{tpu_custom_call.1} parent=5 // pred_check
        %p158 = pneg %p157
      $region22: #{tpu_custom_call.1} parent=5 // pred_check_branch
        %160 = sbr.rel (%p158) target = $region24
      $region23: #{tpu_custom_call.1} parent=5 // pred_region
        // Predicated region
        $region25: #{tpu_custom_call.1} parent=23 // pred_check
          %p161 = pneg %p50
        $region26: #{tpu_custom_call.1} parent=23 // pred_check_branch
          %163 = sbr.rel (%p161) target = $region28
        $region27: #{tpu_custom_call.1} parent=23 // pred_region
          %s164 = sand.u32 %s40, 1
          %s165 = scalar_lea.sflag [#allocation3], %s164
          %s166 = sand.u32 %s40, 1
          %s167 = smul.addr %s166, 128
          %s168 = scalar_lea.vmem [#allocation2], %s167
          %s169 = smul.u32 2, %s24
          %s171 = ssub.s32 2048, 2048
          %172 = vsyncadd %s165, %s171
          %s173 = smul.addr %s169, 8
          %s174 = smul.addr %s23, 16
          %s175 = sadd.s32 %s173, %s174
          %s176 = smul.addr %s175, 128
          %s177 = scalar_lea.hbm %s0, %s176
          %s178 = sshll.u32 %s168, 4
          %s179 = int_to_ptr.vmem [resolvable:$true] %s178
          %184 = dma.hbm_to_vmem [thread:$0]  %s177, 2048, %s179, %s165, 1024, 1024, 64
        $region28: #{tpu_custom_call.1} parent=23 // pred_fallthru
          _
      $region24: #{tpu_custom_call.1} parent=5 // pred_fallthru
        _
      %p185 = scmp.le.s32.totalorder 1, %s16
      %p186 = scmp.lt.s32.totalorder %s16, 3
      %p187 = pnand %p185, %p186
      %p188 = pneg %p187
      // Predicated region
      $region29: #{tpu_custom_call.1} parent=5 // pred_check
        _
      $region30: #{tpu_custom_call.1} parent=5 // pred_check_branch
        %190 = sbr.rel (%p187) target = $region32
      $region31: #{tpu_custom_call.1} parent=5 // pred_region
        %s191 = ssub.s32 %s16, 1
        %s192 = sand.u32 %s43, 1
        %s193 = scalar_lea.sflag [#allocation3], %s192
        %s194 = sand.u32 %s43, 1
        %s195 = smul.addr %s194, 128
        %s196 = scalar_lea.vmem [#allocation2], %s195
        // Predicated region
        $region33: #{tpu_custom_call.1} parent=31 // pred_check
          %p197 = pneg %p56
        $region34: #{tpu_custom_call.1} parent=31 // pred_check_branch
          %199 = sbr.rel (%p197) target = $region36
        $region35: #{tpu_custom_call.1} parent=31 // pred_region
          %200 = dma.done %s193, 2048
        $region36: #{tpu_custom_call.1} parent=31 // pred_fallthru
          _
        // Predicated region
        $region37: #{tpu_custom_call.1} parent=31 // pred_check
          %p201 = pneg %p77
        $region38: #{tpu_custom_call.1} parent=31 // pred_check_branch
          %203 = sbr.rel (%p201) target = $region40
        $region39: #{tpu_custom_call.1} parent=31 // pred_region
          %204 = dma.done [#allocation6], 8192
        $region40: #{tpu_custom_call.1} parent=31 // pred_fallthru
          _
        %s205 = sand.u32 %s43, 1
        %s206 = scalar_lea.sflag [#allocation3], %s205
        %s207 = sand.u32 %s43, 1
        %s208 = smul.addr %s207, 128
        %s209 = scalar_lea.vmem [#allocation2], %s208
        %p210 = pneg %p56
        %p211 = pneg %p53
        %p212 = pneg %p77
        %p213 = pneg %p74
        %p214 = pneg %p98
        %p215 = pneg %p95
        %p216 = pneg %p126
        %p217 = pneg %p123
        %s218 = sand.u32 %s113, 1
        %s219 = scalar_lea.sflag [#allocation4], %s218
        %s220 = sand.u32 %s113, 1
        %s221 = smul.addr %s220, 8
        %s222 = scalar_lea.vmem [#allocation7], %s221
        %s223 = smul.u32 2, %s26
        %s224 = smul.u32 2, %s26
        %v226 = vld [vmem:[%s196] sm:$0xff]
        %v227 = vld [vmem:[%s196 + $0x8] sm:$0xff]
        %v228 = vld [vmem:[%s196 + $0x10] sm:$0xff]
        %v229 = vld [vmem:[%s196 + $0x18] sm:$0xff]
        %v230 = vld [vmem:[%s196 + $0x20] sm:$0xff]
        %v231 = vld [vmem:[%s196 + $0x28] sm:$0xff]
        %v232 = vld [vmem:[%s196 + $0x30] sm:$0xff]
        %v233 = vld [vmem:[%s196 + $0x38] sm:$0xff]
        %v234 = vld [vmem:[%s196 + $0x40] sm:$0xff]
        %v235 = vld [vmem:[%s196 + $0x48] sm:$0xff]
        %v236 = vld [vmem:[%s196 + $0x50] sm:$0xff]
        %v237 = vld [vmem:[%s196 + $0x58] sm:$0xff]
        %v238 = vld [vmem:[%s196 + $0x60] sm:$0xff]
        %v239 = vld [vmem:[%s196 + $0x68] sm:$0xff]
        %v240 = vld [vmem:[%s196 + $0x70] sm:$0xff]
        %v241 = vld [vmem:[%s196 + $0x78] sm:$0xff]
        %v242 = vpack.c.bf16 %v234, %v226
        %v243 = vpack.c.bf16 %v235, %v227
        %v244 = vpack.c.bf16 %v236, %v228
        %v245 = vpack.c.bf16 %v237, %v229
        %v246 = vpack.c.bf16 %v238, %v230
        %v247 = vpack.c.bf16 %v239, %v231
        %v248 = vpack.c.bf16 %v240, %v232
        %v249 = vpack.c.bf16 %v241, %v233
        %v250 = vld [vmem:[#allocation5] sm:$0xf]
        %v251 = vld [vmem:[#allocation5 + $0x4] sm:$0xf]
        %v252 = vld [vmem:[#allocation5 + $0x8] sm:$0xf]
        %v253 = vld [vmem:[#allocation5 + $0xc] sm:$0xf]
        %v254 = vld [vmem:[#allocation5 + $0x10] sm:$0xf]
        %v255 = vld [vmem:[#allocation5 + $0x14] sm:$0xf]
        %v256 = vld [vmem:[#allocation5 + $0x18] sm:$0xf]
        %v257 = vld [vmem:[#allocation5 + $0x1c] sm:$0xf]
        %v258 = vld [vmem:[#allocation5 + $0x20] sm:$0xf]
        %v259 = vld [vmem:[#allocation5 + $0x24] sm:$0xf]
        %v260 = vld [vmem:[#allocation5 + $0x28] sm:$0xf]
        %v261 = vld [vmem:[#allocation5 + $0x2c] sm:$0xf]
        %v262 = vld [vmem:[#allocation5 + $0x30] sm:$0xf]
        %v263 = vld [vmem:[#allocation5 + $0x34] sm:$0xf]
        %v264 = vld [vmem:[#allocation5 + $0x38] sm:$0xf]
        %v265 = vld [vmem:[#allocation5 + $0x3c] sm:$0xf]
        %v266 = vld [vmem:[#allocation5 + $0x40] sm:$0xf]
        %v267 = vld [vmem:[#allocation5 + $0x44] sm:$0xf]
        %v268 = vld [vmem:[#allocation5 + $0x48] sm:$0xf]
        %v269 = vld [vmem:[#allocation5 + $0x4c] sm:$0xf]
        %v270 = vld [vmem:[#allocation5 + $0x50] sm:$0xf]
        %v271 = vld [vmem:[#allocation5 + $0x54] sm:$0xf]
        %v272 = vld [vmem:[#allocation5 + $0x58] sm:$0xf]
        %v273 = vld [vmem:[#allocation5 + $0x5c] sm:$0xf]
        %v274 = vld [vmem:[#allocation5 + $0x60] sm:$0xf]
        %v275 = vld [vmem:[#allocation5 + $0x64] sm:$0xf]
        %v276 = vld [vmem:[#allocation5 + $0x68] sm:$0xf]
        %v277 = vld [vmem:[#allocation5 + $0x6c] sm:$0xf]
        %v278 = vld [vmem:[#allocation5 + $0x70] sm:$0xf]
        %v279 = vld [vmem:[#allocation5 + $0x74] sm:$0xf]
        %v280 = vld [vmem:[#allocation5 + $0x78] sm:$0xf]
        %v281 = vld [vmem:[#allocation5 + $0x7c] sm:$0xf]
        %v282 = vld [vmem:[#allocation5 + $0x80] sm:$0xf]
        %v283 = vld [vmem:[#allocation5 + $0x84] sm:$0xf]
        %v284 = vld [vmem:[#allocation5 + $0x88] sm:$0xf]
        %v285 = vld [vmem:[#allocation5 + $0x8c] sm:$0xf]
        %v286 = vld [vmem:[#allocation5 + $0x90] sm:$0xf]
        %v287 = vld [vmem:[#allocation5 + $0x94] sm:$0xf]
        %v288 = vld [vmem:[#allocation5 + $0x98] sm:$0xf]
        %v289 = vld [vmem:[#allocation5 + $0x9c] sm:$0xf]
        %v290 = vld [vmem:[#allocation5 + $0xa0] sm:$0xf]
        %v291 = vld [vmem:[#allocation5 + $0xa4] sm:$0xf]
        %v292 = vld [vmem:[#allocation5 + $0xa8] sm:$0xf]
        %v293 = vld [vmem:[#allocation5 + $0xac] sm:$0xf]
        %v294 = vld [vmem:[#allocation5 + $0xb0] sm:$0xf]
        %v295 = vld [vmem:[#allocation5 + $0xb4] sm:$0xf]
        %v296 = vld [vmem:[#allocation5 + $0xb8] sm:$0xf]
        %v297 = vld [vmem:[#allocation5 + $0xbc] sm:$0xf]
        %v298 = vld [vmem:[#allocation5 + $0xc0] sm:$0xf]
        %v299 = vld [vmem:[#allocation5 + $0xc4] sm:$0xf]
        %v300 = vld [vmem:[#allocation5 + $0xc8] sm:$0xf]
        %v301 = vld [vmem:[#allocation5 + $0xcc] sm:$0xf]
        %v302 = vld [vmem:[#allocation5 + $0xd0] sm:$0xf]
        %v303 = vld [vmem:[#allocation5 + $0xd4] sm:$0xf]
        %v304 = vld [vmem:[#allocation5 + $0xd8] sm:$0xf]
        %v305 = vld [vmem:[#allocation5 + $0xdc] sm:$0xf]
        %v306 = vld [vmem:[#allocation5 + $0xe0] sm:$0xf]
        %v307 = vld [vmem:[#allocation5 + $0xe4] sm:$0xf]
        %v308 = vld [vmem:[#allocation5 + $0xe8] sm:$0xf]
        %v309 = vld [vmem:[#allocation5 + $0xec] sm:$0xf]
        %v310 = vld [vmem:[#allocation5 + $0xf0] sm:$0xf]
        %v311 = vld [vmem:[#allocation5 + $0xf4] sm:$0xf]
        %v312 = vld [vmem:[#allocation5 + $0xf8] sm:$0xf]
        %v313 = vld [vmem:[#allocation5 + $0xfc] sm:$0xf]
        %v314 = vld [vmem:[#allocation5 + $0x100] sm:$0xf]
        %v315 = vld [vmem:[#allocation5 + $0x104] sm:$0xf]
        %v316 = vld [vmem:[#allocation5 + $0x108] sm:$0xf]
        %v317 = vld [vmem:[#allocation5 + $0x10c] sm:$0xf]
        %v318 = vld [vmem:[#allocation5 + $0x110] sm:$0xf]
        %v319 = vld [vmem:[#allocation5 + $0x114] sm:$0xf]
        %v320 = vld [vmem:[#allocation5 + $0x118] sm:$0xf]
        %v321 = vld [vmem:[#allocation5 + $0x11c] sm:$0xf]
        %v322 = vld [vmem:[#allocation5 + $0x120] sm:$0xf]
        %v323 = vld [vmem:[#allocation5 + $0x124] sm:$0xf]
        %v324 = vld [vmem:[#allocation5 + $0x128] sm:$0xf]
        %v325 = vld [vmem:[#allocation5 + $0x12c] sm:$0xf]
        %v326 = vld [vmem:[#allocation5 + $0x130] sm:$0xf]
        %v327 = vld [vmem:[#allocation5 + $0x134] sm:$0xf]
        %v328 = vld [vmem:[#allocation5 + $0x138] sm:$0xf]
        %v329 = vld [vmem:[#allocation5 + $0x13c] sm:$0xf]
        %v330 = vld [vmem:[#allocation5 + $0x140] sm:$0xf]
        %v331 = vld [vmem:[#allocation5 + $0x144] sm:$0xf]
        %v332 = vld [vmem:[#allocation5 + $0x148] sm:$0xf]
        %v333 = vld [vmem:[#allocation5 + $0x14c] sm:$0xf]
        %v334 = vld [vmem:[#allocation5 + $0x150] sm:$0xf]
        %v335 = vld [vmem:[#allocation5 + $0x154] sm:$0xf]
        %v336 = vld [vmem:[#allocation5 + $0x158] sm:$0xf]
        %v337 = vld [vmem:[#allocation5 + $0x15c] sm:$0xf]
        %v338 = vld [vmem:[#allocation5 + $0x160] sm:$0xf]
        %v339 = vld [vmem:[#allocation5 + $0x164] sm:$0xf]
        %v340 = vld [vmem:[#allocation5 + $0x168] sm:$0xf]
        %v341 = vld [vmem:[#allocation5 + $0x16c] sm:$0xf]
        %v342 = vld [vmem:[#allocation5 + $0x170] sm:$0xf]
        %v343 = vld [vmem:[#allocation5 + $0x174] sm:$0xf]
        %v344 = vld [vmem:[#allocation5 + $0x178] sm:$0xf]
        %v345 = vld [vmem:[#allocation5 + $0x17c] sm:$0xf]
        %v346 = vld [vmem:[#allocation5 + $0x180] sm:$0xf]
        %v347 = vld [vmem:[#allocation5 + $0x184] sm:$0xf]
        %v348 = vld [vmem:[#allocation5 + $0x188] sm:$0xf]
        %v349 = vld [vmem:[#allocation5 + $0x18c] sm:$0xf]
        %v350 = vld [vmem:[#allocation5 + $0x190] sm:$0xf]
        %v351 = vld [vmem:[#allocation5 + $0x194] sm:$0xf]
        %v352 = vld [vmem:[#allocation5 + $0x198] sm:$0xf]
        %v353 = vld [vmem:[#allocation5 + $0x19c] sm:$0xf]
        %v354 = vld [vmem:[#allocation5 + $0x1a0] sm:$0xf]
        %v355 = vld [vmem:[#allocation5 + $0x1a4] sm:$0xf]
        %v356 = vld [vmem:[#allocation5 + $0x1a8] sm:$0xf]
        %v357 = vld [vmem:[#allocation5 + $0x1ac] sm:$0xf]
        %v358 = vld [vmem:[#allocation5 + $0x1b0] sm:$0xf]
        %v359 = vld [vmem:[#allocation5 + $0x1b4] sm:$0xf]
        %v360 = vld [vmem:[#allocation5 + $0x1b8] sm:$0xf]
        %v361 = vld [vmem:[#allocation5 + $0x1bc] sm:$0xf]
        %v362 = vld [vmem:[#allocation5 + $0x1c0] sm:$0xf]
        %v363 = vld [vmem:[#allocation5 + $0x1c4] sm:$0xf]
        %v364 = vld [vmem:[#allocation5 + $0x1c8] sm:$0xf]
        %v365 = vld [vmem:[#allocation5 + $0x1cc] sm:$0xf]
        %v366 = vld [vmem:[#allocation5 + $0x1d0] sm:$0xf]
        %v367 = vld [vmem:[#allocation5 + $0x1d4] sm:$0xf]
        %v368 = vld [vmem:[#allocation5 + $0x1d8] sm:$0xf]
        %v369 = vld [vmem:[#allocation5 + $0x1dc] sm:$0xf]
        %v370 = vld [vmem:[#allocation5 + $0x1e0] sm:$0xf]
        %v371 = vld [vmem:[#allocation5 + $0x1e4] sm:$0xf]
        %v372 = vld [vmem:[#allocation5 + $0x1e8] sm:$0xf]
        %v373 = vld [vmem:[#allocation5 + $0x1ec] sm:$0xf]
        %v374 = vld [vmem:[#allocation5 + $0x1f0] sm:$0xf]
        %v375 = vld [vmem:[#allocation5 + $0x1f4] sm:$0xf]
        %v376 = vld [vmem:[#allocation5 + $0x1f8] sm:$0xf]
        %v377 = vld [vmem:[#allocation5 + $0x1fc] sm:$0xf]
        %v378 = vld [vmem:[%s2] sm:$0x1]
        %v380 = vlaneseq
        %v381 = vshrl.u32 %v380, 7
        %v382 = vsub.s32 0, %v381
        %v383 = vrot.slane %v378, %v382
        %v513 = vunpack.c.l.b16 %v250
        %v514 = vunpack.c.l.b16 %v251
        %v515 = vunpack.c.l.b16 %v252
        %v516 = vunpack.c.l.b16 %v253
        %v517 = vunpack.c.l.b16 %v254
        %v518 = vunpack.c.l.b16 %v255
        %v519 = vunpack.c.l.b16 %v256
        %v520 = vunpack.c.l.b16 %v257
        %v521 = vunpack.c.l.b16 %v258
        %v522 = vunpack.c.l.b16 %v259
        %v523 = vunpack.c.l.b16 %v260
        %v524 = vunpack.c.l.b16 %v261
        %v525 = vunpack.c.l.b16 %v262
        %v526 = vunpack.c.l.b16 %v263
        %v527 = vunpack.c.l.b16 %v264
        %v528 = vunpack.c.l.b16 %v265
        %v529 = vunpack.c.l.b16 %v266
        %v530 = vunpack.c.l.b16 %v267
        %v531 = vunpack.c.l.b16 %v268
        %v532 = vunpack.c.l.b16 %v269
        %v533 = vunpack.c.l.b16 %v270
        %v534 = vunpack.c.l.b16 %v271
        %v535 = vunpack.c.l.b16 %v272
        %v536 = vunpack.c.l.b16 %v273
        %v537 = vunpack.c.l.b16 %v274
        %v538 = vunpack.c.l.b16 %v275
        %v539 = vunpack.c.l.b16 %v276
        %v540 = vunpack.c.l.b16 %v277
        %v541 = vunpack.c.l.b16 %v278
        %v542 = vunpack.c.l.b16 %v279
        %v543 = vunpack.c.l.b16 %v280
        %v544 = vunpack.c.l.b16 %v281
        %v545 = vunpack.c.l.b16 %v282
        %v546 = vunpack.c.l.b16 %v283
        %v547 = vunpack.c.l.b16 %v284
        %v548 = vunpack.c.l.b16 %v285
        %v549 = vunpack.c.l.b16 %v286
        %v550 = vunpack.c.l.b16 %v287
        %v551 = vunpack.c.l.b16 %v288
        %v552 = vunpack.c.l.b16 %v289
        %v553 = vunpack.c.l.b16 %v290
        %v554 = vunpack.c.l.b16 %v291
        %v555 = vunpack.c.l.b16 %v292
        %v556 = vunpack.c.l.b16 %v293
        %v557 = vunpack.c.l.b16 %v294
        %v558 = vunpack.c.l.b16 %v295
        %v559 = vunpack.c.l.b16 %v296
        %v560 = vunpack.c.l.b16 %v297
        %v561 = vunpack.c.l.b16 %v298
        %v562 = vunpack.c.l.b16 %v299
        %v563 = vunpack.c.l.b16 %v300
        %v564 = vunpack.c.l.b16 %v301
        %v565 = vunpack.c.l.b16 %v302
        %v566 = vunpack.c.l.b16 %v303
        %v567 = vunpack.c.l.b16 %v304
        %v568 = vunpack.c.l.b16 %v305
        %v569 = vunpack.c.l.b16 %v306
        %v570 = vunpack.c.l.b16 %v307
        %v571 = vunpack.c.l.b16 %v308
        %v572 = vunpack.c.l.b16 %v309
        %v573 = vunpack.c.l.b16 %v310
        %v574 = vunpack.c.l.b16 %v311
        %v575 = vunpack.c.l.b16 %v312
        %v576 = vunpack.c.l.b16 %v313
        %v577 = vunpack.c.l.b16 %v314
        %v578 = vunpack.c.l.b16 %v315
        %v579 = vunpack.c.l.b16 %v316
        %v580 = vunpack.c.l.b16 %v317
        %v581 = vunpack.c.l.b16 %v318
        %v582 = vunpack.c.l.b16 %v319
        %v583 = vunpack.c.l.b16 %v320
        %v584 = vunpack.c.l.b16 %v321
        %v585 = vunpack.c.l.b16 %v322
        %v586 = vunpack.c.l.b16 %v323
        %v587 = vunpack.c.l.b16 %v324
        %v588 = vunpack.c.l.b16 %v325
        %v589 = vunpack.c.l.b16 %v326
        %v590 = vunpack.c.l.b16 %v327
        %v591 = vunpack.c.l.b16 %v328
        %v592 = vunpack.c.l.b16 %v329
        %v593 = vunpack.c.l.b16 %v330
        %v594 = vunpack.c.l.b16 %v331
        %v595 = vunpack.c.l.b16 %v332
        %v596 = vunpack.c.l.b16 %v333
        %v597 = vunpack.c.l.b16 %v334
        %v598 = vunpack.c.l.b16 %v335
        %v599 = vunpack.c.l.b16 %v336
        %v600 = vunpack.c.l.b16 %v337
        %v601 = vunpack.c.l.b16 %v338
        %v602 = vunpack.c.l.b16 %v339
        %v603 = vunpack.c.l.b16 %v340
        %v604 = vunpack.c.l.b16 %v341
        %v605 = vunpack.c.l.b16 %v342
        %v606 = vunpack.c.l.b16 %v343
        %v607 = vunpack.c.l.b16 %v344
        %v608 = vunpack.c.l.b16 %v345
        %v609 = vunpack.c.l.b16 %v346
        %v610 = vunpack.c.l.b16 %v347
        %v611 = vunpack.c.l.b16 %v348
        %v612 = vunpack.c.l.b16 %v349
        %v613 = vunpack.c.l.b16 %v350
        %v614 = vunpack.c.l.b16 %v351
        %v615 = vunpack.c.l.b16 %v352
        %v616 = vunpack.c.l.b16 %v353
        %v617 = vunpack.c.l.b16 %v354
        %v618 = vunpack.c.l.b16 %v355
        %v619 = vunpack.c.l.b16 %v356
        %v620 = vunpack.c.l.b16 %v357
        %v621 = vunpack.c.l.b16 %v358
        %v622 = vunpack.c.l.b16 %v359
        %v623 = vunpack.c.l.b16 %v360
        %v624 = vunpack.c.l.b16 %v361
        %v625 = vunpack.c.l.b16 %v362
        %v626 = vunpack.c.l.b16 %v363
        %v627 = vunpack.c.l.b16 %v364
        %v628 = vunpack.c.l.b16 %v365
        %v629 = vunpack.c.l.b16 %v366
        %v630 = vunpack.c.l.b16 %v367
        %v631 = vunpack.c.l.b16 %v368
        %v632 = vunpack.c.l.b16 %v369
        %v633 = vunpack.c.l.b16 %v370
        %v634 = vunpack.c.l.b16 %v371
        %v635 = vunpack.c.l.b16 %v372
        %v636 = vunpack.c.l.b16 %v373
        %v637 = vunpack.c.l.b16 %v374
        %v638 = vunpack.c.l.b16 %v375
        %v639 = vunpack.c.l.b16 %v376
        %v640 = vunpack.c.l.b16 %v377
        %v641 = vpack.c.b16 %v514, %v513
        %v642 = vpack.c.b16 %v516, %v515
        %v643 = vpack.c.b16 %v518, %v517
        %v644 = vpack.c.b16 %v520, %v519
        %v645 = vpack.c.b16 %v522, %v521
        %v646 = vpack.c.b16 %v524, %v523
        %v647 = vpack.c.b16 %v526, %v525
        %v648 = vpack.c.b16 %v528, %v527
        %v649 = vpack.c.b16 %v530, %v529
        %v650 = vpack.c.b16 %v532, %v531
        %v651 = vpack.c.b16 %v534, %v533
        %v652 = vpack.c.b16 %v536, %v535
        %v653 = vpack.c.b16 %v538, %v537
        %v654 = vpack.c.b16 %v540, %v539
        %v655 = vpack.c.b16 %v542, %v541
        %v656 = vpack.c.b16 %v544, %v543
        %v657 = vpack.c.b16 %v546, %v545
        %v658 = vpack.c.b16 %v548, %v547
        %v659 = vpack.c.b16 %v550, %v549
        %v660 = vpack.c.b16 %v552, %v551
        %v661 = vpack.c.b16 %v554, %v553
        %v662 = vpack.c.b16 %v556, %v555
        %v663 = vpack.c.b16 %v558, %v557
        %v664 = vpack.c.b16 %v560, %v559
        %v665 = vpack.c.b16 %v562, %v561
        %v666 = vpack.c.b16 %v564, %v563
        %v667 = vpack.c.b16 %v566, %v565
        %v668 = vpack.c.b16 %v568, %v567
        %v669 = vpack.c.b16 %v570, %v569
        %v670 = vpack.c.b16 %v572, %v571
        %v671 = vpack.c.b16 %v574, %v573
        %v672 = vpack.c.b16 %v576, %v575
        %v673 = vpack.c.b16 %v578, %v577
        %v674 = vpack.c.b16 %v580, %v579
        %v675 = vpack.c.b16 %v582, %v581
        %v676 = vpack.c.b16 %v584, %v583
        %v677 = vpack.c.b16 %v586, %v585
        %v678 = vpack.c.b16 %v588, %v587
        %v679 = vpack.c.b16 %v590, %v589
        %v680 = vpack.c.b16 %v592, %v591
        %v681 = vpack.c.b16 %v594, %v593
        %v682 = vpack.c.b16 %v596, %v595
        %v683 = vpack.c.b16 %v598, %v597
        %v684 = vpack.c.b16 %v600, %v599
        %v685 = vpack.c.b16 %v602, %v601
        %v686 = vpack.c.b16 %v604, %v603
        %v687 = vpack.c.b16 %v606, %v605
        %v688 = vpack.c.b16 %v608, %v607
        %v689 = vpack.c.b16 %v610, %v609
        %v690 = vpack.c.b16 %v612, %v611
        %v691 = vpack.c.b16 %v614, %v613
        %v692 = vpack.c.b16 %v616, %v615
        %v693 = vpack.c.b16 %v618, %v617
        %v694 = vpack.c.b16 %v620, %v619
        %v695 = vpack.c.b16 %v622, %v621
        %v696 = vpack.c.b16 %v624, %v623
        %v697 = vpack.c.b16 %v626, %v625
        %v698 = vpack.c.b16 %v628, %v627
        %v699 = vpack.c.b16 %v630, %v629
        %v700 = vpack.c.b16 %v632, %v631
        %v701 = vpack.c.b16 %v634, %v633
        %v702 = vpack.c.b16 %v636, %v635
        %v703 = vpack.c.b16 %v638, %v637
        %v704 = vpack.c.b16 %v640, %v639
        %769 = vmatprep.subr.bf16.mxu0 0
        %770 = vmatpush1.bf16.msra.mxu0 %v648
        %771 = vmatprep.subr.bf16.mxu0 0
        %772 = vmatpush1.bf16.msra.mxu0 %v647
        %773 = vmatprep.subr.bf16.mxu0 0
        %774 = vmatpush1.bf16.msra.mxu0 %v646
        %775 = vmatprep.subr.bf16.mxu0 0
        %776 = vmatpush1.bf16.msra.mxu0 %v645
        %777 = vmatprep.subr.bf16.mxu0 0
        %778 = vmatpush1.bf16.msra.mxu0 %v644
        %779 = vmatprep.subr.bf16.mxu0 0
        %780 = vmatpush1.bf16.msra.mxu0 %v643
        %781 = vmatprep.subr.bf16.mxu0 0
        %782 = vmatpush1.bf16.msra.mxu0 %v642
        %783 = vmatprep.subr.bf16.mxu0 0
        %784 = vmatpush1.bf16.msra.mxu0 %v641
        %785 = vmatprep.subr.bf16.mxu0 0
        %786 = vmatpush2.bf16.msra.mxu0 %v656
        %787 = vmatprep.subr.bf16.mxu0 0
        %788 = vmatpush2.bf16.msra.mxu0 %v655
        %789 = vmatprep.subr.bf16.mxu0 0
        %790 = vmatpush2.bf16.msra.mxu0 %v654
        %791 = vmatprep.subr.bf16.mxu0 0
        %792 = vmatpush2.bf16.msra.mxu0 %v653
        %793 = vmatprep.subr.bf16.mxu0 0
        %794 = vmatpush2.bf16.msra.mxu0 %v652
        %795 = vmatprep.subr.bf16.mxu0 0
        %796 = vmatpush2.bf16.msra.mxu0 %v651
        %797 = vmatprep.subr.bf16.mxu0 0
        %798 = vmatpush2.bf16.msra.mxu0 %v650
        %799 = vmatprep.subr.bf16.mxu0 0
        %800 = vmatpush2.bf16.msra.mxu0 %v649
        %801 = vmatprep.mubr.bf16.mxu0 %v243
        %802 = vmatmul.mubr.bf16.gmra.mxu0 %v242
        %v803 = vpop.f32.mrf.mxu0
        %v804 = vadd.f32 %v383, %v803
        %v805 = vpop.f32.mrf.mxu0
        %v806 = vpop.f32.mrf.mxu0
        %v807 = vadd.f32 %v383, %v806
        %v808 = vpop.f32.mrf.mxu0
        %809 = vdwg.mxu0
        %810 = vmatprep.subr.bf16.mxu0 0
        %811 = vmatpush1.bf16.msra.mxu0 %v664
        %812 = vmatprep.subr.bf16.mxu0 0
        %813 = vmatpush1.bf16.msra.mxu0 %v663
        %814 = vmatprep.subr.bf16.mxu0 0
        %815 = vmatpush1.bf16.msra.mxu0 %v662
        %816 = vmatprep.subr.bf16.mxu0 0
        %817 = vmatpush1.bf16.msra.mxu0 %v661
        %818 = vmatprep.subr.bf16.mxu0 0
        %819 = vmatpush1.bf16.msra.mxu0 %v660
        %820 = vmatprep.subr.bf16.mxu0 0
        %821 = vmatpush1.bf16.msra.mxu0 %v659
        %822 = vmatprep.subr.bf16.mxu0 0
        %823 = vmatpush1.bf16.msra.mxu0 %v658
        %824 = vmatprep.subr.bf16.mxu0 0
        %825 = vmatpush1.bf16.msra.mxu0 %v657
        %826 = vmatprep.subr.bf16.mxu0 0
        %827 = vmatpush2.bf16.msra.mxu0 %v672
        %828 = vmatprep.subr.bf16.mxu0 0
        %829 = vmatpush2.bf16.msra.mxu0 %v671
        %830 = vmatprep.subr.bf16.mxu0 0
        %831 = vmatpush2.bf16.msra.mxu0 %v670
        %832 = vmatprep.subr.bf16.mxu0 0
        %833 = vmatpush2.bf16.msra.mxu0 %v669
        %834 = vmatprep.subr.bf16.mxu0 0
        %835 = vmatpush2.bf16.msra.mxu0 %v668
        %836 = vmatprep.subr.bf16.mxu0 0
        %837 = vmatpush2.bf16.msra.mxu0 %v667
        %838 = vmatprep.subr.bf16.mxu0 0
        %839 = vmatpush2.bf16.msra.mxu0 %v666
        %840 = vmatprep.subr.bf16.mxu0 0
        %841 = vmatpush2.bf16.msra.mxu0 %v665
        %842 = vmatprep.mubr.bf16.mxu0 %v245
        %843 = vmatmul.mubr.bf16.gmra.mxu0 %v244
        %v844 = vpop.f32.mrf.mxu0
        %v845 = vadd.f32 %v804, %v844
        %v846 = vpop.f32.mrf.mxu0
        %v847 = vpop.f32.mrf.mxu0
        %v848 = vadd.f32 %v807, %v847
        %v849 = vpop.f32.mrf.mxu0
        %850 = vdwg.mxu0
        %851 = vmatprep.subr.bf16.mxu0 0
        %852 = vmatpush1.bf16.msra.mxu0 %v680
        %853 = vmatprep.subr.bf16.mxu0 0
        %854 = vmatpush1.bf16.msra.mxu0 %v679
        %855 = vmatprep.subr.bf16.mxu0 0
        %856 = vmatpush1.bf16.msra.mxu0 %v678
        %857 = vmatprep.subr.bf16.mxu0 0
        %858 = vmatpush1.bf16.msra.mxu0 %v677
        %859 = vmatprep.subr.bf16.mxu0 0
        %860 = vmatpush1.bf16.msra.mxu0 %v676
        %861 = vmatprep.subr.bf16.mxu0 0
        %862 = vmatpush1.bf16.msra.mxu0 %v675
        %863 = vmatprep.subr.bf16.mxu0 0
        %864 = vmatpush1.bf16.msra.mxu0 %v674
        %865 = vmatprep.subr.bf16.mxu0 0
        %866 = vmatpush1.bf16.msra.mxu0 %v673
        %867 = vmatprep.subr.bf16.mxu0 0
        %868 = vmatpush2.bf16.msra.mxu0 %v688
        %869 = vmatprep.subr.bf16.mxu0 0
        %870 = vmatpush2.bf16.msra.mxu0 %v687
        %871 = vmatprep.subr.bf16.mxu0 0
        %872 = vmatpush2.bf16.msra.mxu0 %v686
        %873 = vmatprep.subr.bf16.mxu0 0
        %874 = vmatpush2.bf16.msra.mxu0 %v685
        %875 = vmatprep.subr.bf16.mxu0 0
        %876 = vmatpush2.bf16.msra.mxu0 %v684
        %877 = vmatprep.subr.bf16.mxu0 0
        %878 = vmatpush2.bf16.msra.mxu0 %v683
        %879 = vmatprep.subr.bf16.mxu0 0
        %880 = vmatpush2.bf16.msra.mxu0 %v682
        %881 = vmatprep.subr.bf16.mxu0 0
        %882 = vmatpush2.bf16.msra.mxu0 %v681
        %883 = vmatprep.mubr.bf16.mxu0 %v247
        %884 = vmatmul.mubr.bf16.gmra.mxu0 %v246
        %v885 = vpop.f32.mrf.mxu0
        %v886 = vadd.f32 %v845, %v885
        %v887 = vpop.f32.mrf.mxu0
        %v888 = vpop.f32.mrf.mxu0
        %v889 = vadd.f32 %v848, %v888
        %v890 = vpop.f32.mrf.mxu0
        %891 = vdwg.mxu0
        %892 = vmatprep.subr.bf16.mxu0 0
        %893 = vmatpush1.bf16.msra.mxu0 %v696
        %894 = vmatprep.subr.bf16.mxu0 0
        %895 = vmatpush1.bf16.msra.mxu0 %v695
        %896 = vmatprep.subr.bf16.mxu0 0
        %897 = vmatpush1.bf16.msra.mxu0 %v694
        %898 = vmatprep.subr.bf16.mxu0 0
        %899 = vmatpush1.bf16.msra.mxu0 %v693
        %900 = vmatprep.subr.bf16.mxu0 0
        %901 = vmatpush1.bf16.msra.mxu0 %v692
        %902 = vmatprep.subr.bf16.mxu0 0
        %903 = vmatpush1.bf16.msra.mxu0 %v691
        %904 = vmatprep.subr.bf16.mxu0 0
        %905 = vmatpush1.bf16.msra.mxu0 %v690
        %906 = vmatprep.subr.bf16.mxu0 0
        %907 = vmatpush1.bf16.msra.mxu0 %v689
        %908 = vmatprep.subr.bf16.mxu0 0
        %909 = vmatpush2.bf16.msra.mxu0 %v704
        %910 = vmatprep.subr.bf16.mxu0 0
        %911 = vmatpush2.bf16.msra.mxu0 %v703
        %912 = vmatprep.subr.bf16.mxu0 0
        %913 = vmatpush2.bf16.msra.mxu0 %v702
        %914 = vmatprep.subr.bf16.mxu0 0
        %915 = vmatpush2.bf16.msra.mxu0 %v701
        %916 = vmatprep.subr.bf16.mxu0 0
        %917 = vmatpush2.bf16.msra.mxu0 %v700
        %918 = vmatprep.subr.bf16.mxu0 0
        %919 = vmatpush2.bf16.msra.mxu0 %v699
        %920 = vmatprep.subr.bf16.mxu0 0
        %921 = vmatpush2.bf16.msra.mxu0 %v698
        %922 = vmatprep.subr.bf16.mxu0 0
        %923 = vmatpush2.bf16.msra.mxu0 %v697
        %924 = vmatprep.mubr.bf16.mxu0 %v249
        %925 = vmatmul.mubr.bf16.gmra.mxu0 %v248
        %v926 = vpop.f32.mrf.mxu0
        %v927 = vadd.f32 %v886, %v926
        %v928 = vpop.f32.mrf.mxu0
        %v929 = vpop.f32.mrf.mxu0
        %v930 = vadd.f32 %v889, %v929
        %v931 = vpop.f32.mrf.mxu0
        %932 = vdwg.mxu0
        %s933 = smul.u32 %s26, 16
        %v934 = vlaneseq
        %v935 = vshrl.u32 %v934, 7
        %v936 = vadd.s32 %v935, 8
        %v937 = vstv %s933
        %v938 = vadd.s32 %v937, %v935
        %v939 = vadd.s32 %v937, %v936
        %vm940 = vcmp.lt.s32.totalorder %v938, 16
        %vm941 = vcmp.lt.s32.totalorder %v939, 16
        %v942 = vsel %vm940, 1, 0
        %v943 = vsel %vm941, 1, 0
        %vm944 = vcmp.eq.s32.totalorder %v942, 1
        %vm945 = vcmp.eq.s32.totalorder %v943, 1
        %v946 = vsel %vm944, %v927, 0.0
        %v947 = vsel %vm945, %v930, 0.0
        %v948 = vpack.c.bf16 %v947, %v946
        %v950 = vunpack.c.l.b16 %v948
        %v951 = vunpack.c.h.b16 %v948
        %v952 = vpack.c.b16 %v950, %v950
        %v953 = vpack.c.b16 %v951, %v951
        %956 = vst [vmem:[%s222] sm:$0xf] %v952
        %957 = vst [vmem:[%s222 + $0x4] sm:$0xf] %v953
        %s958 = sand.u32 %s113, 1
        %s959 = scalar_lea.sflag [#allocation4], %s958
        %s960 = sand.u32 %s113, 1
        %s961 = smul.addr %s960, 8
        %s962 = scalar_lea.vmem [#allocation7], %s961
        // Predicated region
        $region41: #{tpu_custom_call.1} parent=31 // pred_check
          %p963 = pneg %p123
        $region42: #{tpu_custom_call.1} parent=31 // pred_check_branch
          %965 = sbr.rel (%p963) target = $region44
        $region43: #{tpu_custom_call.1} parent=31 // pred_region
          %s966 = smul.u32 2, %s26
          %s968 = ssub.s32 128, 128
          %969 = vsyncadd %s959, %s968
          %s970 = smul.addr %s25, 2
          %s971 = sadd.s32 %s966, %s970
          %s972 = smul.addr %s971, 64
          %s973 = scalar_lea.hbm %s3, %s972
          %s974 = sshll.u32 %s962, 4
          %s975 = int_to_ptr.vmem [resolvable:$true] %s974
          %980 = dma.vmem_to_hbm [thread:$0]  %s975, 128, %s973, %s959, 64, 64, 4
        $region44: #{tpu_custom_call.1} parent=31 // pred_fallthru
          _
      $region32: #{tpu_custom_call.1} parent=5 // pred_fallthru
        _
      %p981 = scmp.le.s32.totalorder 2, %s16
      // Predicated region
      $region45: #{tpu_custom_call.1} parent=5 // pred_check
        %p982 = pneg %p981
      $region46: #{tpu_custom_call.1} parent=5 // pred_check_branch
        %984 = sbr.rel (%p982) target = $region48
      $region47: #{tpu_custom_call.1} parent=5 // pred_region
        %s985 = ssub.s32 %s16, 2
        // Predicated region
        $region49: #{tpu_custom_call.1} parent=47 // pred_check
          %p986 = pneg %p129
        $region50: #{tpu_custom_call.1} parent=47 // pred_check_branch
          %988 = sbr.rel (%p986) target = $region52
        $region51: #{tpu_custom_call.1} parent=47 // pred_region
          %s989 = sand.u32 %s114, 1
          %s990 = scalar_lea.sflag [#allocation4], %s989
          %s991 = sand.u32 %s114, 1
          %s992 = smul.addr %s991, 8
          %s993 = scalar_lea.vmem [#allocation7], %s992
          %994 = dma.done %s990, 128
        $region52: #{tpu_custom_call.1} parent=47 // pred_fallthru
          _
      $region48: #{tpu_custom_call.1} parent=5 // pred_fallthru
        _
    $region6: #{tpu_custom_call.1} parent=1 // loop_footer
      %s20 = sadd.s32 1, %s16
    $region7: #{tpu_custom_call.1} parent=1 // loop_footer_branch
      %15 = sbr.rel target = $region3
    $region8: #{tpu_custom_call.1} parent=1 // loop_exit
      _
    %995 = vsyncpa [#allocation3], 1
    %s996 = scalar_lea.sflag [#allocation3], 1
    %997 = vsyncpa %s996, 1
    %998 = vsyncpa [#allocation6], 1
    %999 = vsyncpa [#allocation4], 1
    %s1000 = scalar_lea.sflag [#allocation4], 1
    %1001 = vsyncpa %s1000, 1

</llo_original>
